<compile_context>
chip_gen: v7x
topology: tpu7x:2x2x1
jax: 0.10.0
libtpu: 0.0.40
codegen_flags: <defaults>
</compile_context>

<pallas_src>
import math

import jax
import jax.numpy as jnp
from jax.experimental import pallas as pl
from jax.experimental.pallas import tpu as pltpu

NEG_SLOPE = 0.01  # F.leaky_relu default negative_slope


def _leaky_relu(v):
    # max(v, a*v) == leaky_relu(v) for 0 <= a <= 1 (mul + max, 2 VALU ops).
    return jnp.maximum(v, NEG_SLOPE * v)


def encoder_layer_kernel(x_ref, w1_ref, b1_ref, w2_ref, b2_ref, o_ref):
    # x_ref : (1, bn)        lane-dense input rows
    # w1_ref: (16, 1)   b1_ref: (16, 1)
    # w2_ref: (16, D)   b2_ref: (1, D)
    # o_ref : (bn, D)        row-major output block (no wrapper transpose)
    x = x_ref[...]                                     # (1, bn)
    # Layer 1: K=1 contraction -> VPU broadcast multiply-add (exact f32, no MXU).
    h = _leaky_relu(w1_ref[...] * x + b1_ref[...])     # (16, bn)
    # Layer 2 on the MXU: contract h's hidden axis (dim 0) with w2's dim 0 so the
    # result lands directly in (bn, D) row-major orientation; HIGHEST keeps f32.
    y = jax.lax.dot_general(
        h, w2_ref[...],
        dimension_numbers=(((0,), (0,)), ((), ())),
        preferred_element_type=jnp.float32,
        precision=jax.lax.Precision.HIGHEST,
    )                                                  # (bn, D)
    y = _leaky_relu(y + b2_ref[...])
    o_ref[...] = y.astype(o_ref.dtype)


def _round_up(v, m):
    return (v + m - 1) // m * m


def encoder_layer(x, w1, b1, w2, b2, *, block_n=32768, vmem_budget_bytes=26 << 20):
    """x: (..., 1) f32. w1: (1,16), b1: (16,), w2: (16,D), b2: (D,). Returns (..., D)."""
    orig_shape = x.shape
    assert orig_shape[-1] == 1, "EncoderLayer expects last dim == 1"
    n = math.prod(orig_shape[:-1]) if len(orig_shape) > 1 else 1
    hidden = w1.shape[1]          # 16
    out_dim = w2.shape[1]

    # Lane-dense input rows (contiguous reshape, free); weights as columns/rows.
    x_row = x.reshape(1, n)
    w1_col = w1.reshape(hidden, 1)
    b1_col = b1.reshape(hidden, 1)
    b2_row = b2.reshape(1, out_dim)

    # --- VMEM-budgeted rows-per-grid-step ------------------------------------
    # (bn, D) VMEM tiles are padded to 128 lanes, so budget with padded width.
    lane_d = _round_up(out_dim, 128)
    bytes_per_row = (
        2 * 8 * 4            # 2x (1, bn) input buffers (8-sublane padded)
        + 2 * lane_d * 4     # 2x (bn, D) output buffers (128-lane padded)
        + 3 * hidden * 4     # h + broadcast w1/b1 intermediates, (16, bn)
        + 128 * 4            # transposed hidden (bn, 16), lane padded
        + 2 * lane_d * 4     # layer-2 temporaries (bn, D), lane padded
    )
    bn_cap = max(128, (vmem_budget_bytes // bytes_per_row) // 128 * 128)
    bn_cap = min(bn_cap, _round_up(block_n, 128))

    if n <= bn_cap:
        bn = n               # single exact block: no padding, no masked tail
    else:
        bn = bn_cap          # multiple of 128; Pallas masks the ragged last block

    grid = (pl.cdiv(n, bn),)

    cost = pl.CostEstimate(
        flops=2 * n * hidden * (1 + out_dim),
        transcendentals=0,
        bytes_accessed=4 * (n * (1 + out_dim) + hidden * (2 + out_dim) + out_dim),
    )

    out = pl.pallas_call(
        encoder_layer_kernel,
        out_shape=jax.ShapeDtypeStruct((n, out_dim), jnp.float32),
        grid=grid,
        in_specs=[
            pl.BlockSpec((1, bn), lambda i: (0, i)),
            # Constant index_maps: weights/biases fetched once, stay VMEM-resident.
            pl.BlockSpec((hidden, 1), lambda i: (0, 0)),
            pl.BlockSpec((hidden, 1), lambda i: (0, 0)),
            pl.BlockSpec((hidden, out_dim), lambda i: (0, 0)),
            pl.BlockSpec((1, out_dim), lambda i: (0, 0)),
        ],
        out_specs=pl.BlockSpec((bn, out_dim), lambda i: (i, 0)),
        compiler_params=pltpu.CompilerParams(
            dimension_semantics=("parallel",),   # rows independent; shards across TCs
            vmem_limit_bytes=40 * 1024 * 1024,   # headroom over the 26 MiB budget
        ),
        cost_estimate=cost,
    )(x_row, w1_col, b1_col, w2, b2_row)

    # Free metadata reshape back to the original batch shape.
    return out.reshape(*orig_shape[:-1], out_dim)


def init_params(key, output_dim):
    """Deterministic init matching nn.Linear shapes (stored transposed: (in, out))."""
    k1, k2, k3, k4 = jax.random.split(key, 4)
    # dense1: Linear(1, 16); PyTorch init bound = 1/sqrt(in_features) = 1
    w1 = jax.random.uniform(k1, (1, 16), jnp.float32, -1.0, 1.0)
    b1 = jax.random.uniform(k2, (16,), jnp.float32, -1.0, 1.0)
    # dense2: Linear(16, output_dim)
    bound = 1.0 / jnp.sqrt(16.0)
    w2 = jax.random.uniform(k3, (16, output_dim), jnp.float32, -bound, bound)
    b2 = jax.random.uniform(k4, (output_dim,), jnp.float32, -bound, bound)
    return w1, b1, w2, b2


if __name__ == "__main__":
    key = jax.random.PRNGKey(0)
    kx, kp = jax.random.split(key)

    output_dim = 32
    batch, seq = 2, 8
    x = jax.random.normal(kx, (batch, seq, 1), jnp.float32)

    w1, b1, w2, b2 = init_params(kp, output_dim)

    y = jax.block_until_ready(encoder_layer(x, w1, b1, w2, b2))

    # Pure-JAX reference (same math, f32 matmul, no Pallas).
    def ref(xv):
        h = xv @ w1 + b1
        h = jnp.where(h >= 0, h, NEG_SLOPE * h)
        o = jnp.dot(h, w2, precision=jax.lax.Precision.HIGHEST) + b2
        return jnp.where(o >= 0, o, NEG_SLOPE * o)

    y_ref = ref(x)
    assert y.shape == (batch, seq, output_dim)
    assert jnp.allclose(y, y_ref, atol=1e-5, rtol=1e-5)

    print("KERNEL_OK")
</pallas_src>

<mosaic_0001>
module attributes {stable_mosaic.version = 11 : i64} {
  func.func @encoder_layer_kernel(%arg0: i32, %arg1: memref<1x16xf32, #tpu.memory_space<vmem>>, %arg2: memref<16x1xf32, #tpu.memory_space<vmem>>, %arg3: memref<16x1xf32, #tpu.memory_space<vmem>>, %arg4: memref<16x32xf32, #tpu.memory_space<vmem>>, %arg5: memref<1x32xf32, #tpu.memory_space<vmem>>, %arg6: memref<16x32xf32, #tpu.memory_space<vmem>>) attributes {dimension_semantics = [#tpu.dimension_semantics<parallel>], iteration_bounds = array<i64: 1>, scalar_prefetch = 0 : i64, scratch_operands = 0 : i64, tpu.core_type = #tpu.core_type<tc>, window_params = [{transform_indices = @transform_0, window_bounds = array<i64: 1, 16>}, {pipeline_mode = #tpu.pipeline_mode<synchronous>, transform_indices = @transform_1, window_bounds = array<i64: 16, 1>}, {pipeline_mode = #tpu.pipeline_mode<synchronous>, transform_indices = @transform_2, window_bounds = array<i64: 16, 1>}, {pipeline_mode = #tpu.pipeline_mode<synchronous>, transform_indices = @transform_3, window_bounds = array<i64: 16, 32>}, {pipeline_mode = #tpu.pipeline_mode<synchronous>, transform_indices = @transform_4, window_bounds = array<i64: 1, 32>}, {transform_indices = @transform_5, window_bounds = array<i64: 16, 32>}]} {
    %c0 = arith.constant 0 : index
    %c0_0 = arith.constant 0 : index
    %0 = vector.load %arg1[%c0, %c0_0] : memref<1x16xf32, #tpu.memory_space<vmem>>, vector<1x16xf32>
    %c0_1 = arith.constant 0 : index
    %c0_2 = arith.constant 0 : index
    %1 = vector.load %arg2[%c0_1, %c0_2] : memref<16x1xf32, #tpu.memory_space<vmem>>, vector<16x1xf32>
    %2 = vector.broadcast %1 : vector<16x1xf32> to vector<16x16xf32>
    %3 = vector.broadcast %0 : vector<1x16xf32> to vector<16x16xf32>
    %4 = arith.mulf %2, %3 : vector<16x16xf32>
    %c0_3 = arith.constant 0 : index
    %c0_4 = arith.constant 0 : index
    %5 = vector.load %arg3[%c0_3, %c0_4] : memref<16x1xf32, #tpu.memory_space<vmem>>, vector<16x1xf32>
    %6 = vector.broadcast %5 : vector<16x1xf32> to vector<16x16xf32>
    %7 = arith.addf %4, %6 : vector<16x16xf32>
    %cst = arith.constant 0.00999999977 : f32
    %8 = vector.broadcast %cst : f32 to vector<16x16xf32>
    %9 = arith.mulf %8, %7 : vector<16x16xf32>
    %10 = arith.maximumf %7, %9 : vector<16x16xf32>
    %c0_5 = arith.constant 0 : index
    %c0_6 = arith.constant 0 : index
    %11 = vector.load %arg4[%c0_5, %c0_6] : memref<16x32xf32, #tpu.memory_space<vmem>>, vector<16x32xf32>
    %cst_7 = arith.constant dense<0.000000e+00> : vector<16x32xf32>
    %12 = tpu.matmul %10, %11, %cst_7 {dimension_numbers = #tpu.dot_dimension_numbers<[0], [0], [1], [1], [0, 1, 1, 1], [], []>, precision = #tpu.contract_precision<fp32>} : vector<16x16xf32>, vector<16x32xf32>, vector<16x32xf32> -> vector<16x32xf32>
    %c0_8 = arith.constant 0 : index
    %c0_9 = arith.constant 0 : index
    %13 = vector.load %arg5[%c0_8, %c0_9] : memref<1x32xf32, #tpu.memory_space<vmem>>, vector<1x32xf32>
    %14 = vector.broadcast %13 : vector<1x32xf32> to vector<16x32xf32>
    %15 = arith.addf %12, %14 : vector<16x32xf32>
    %cst_10 = arith.constant 0.00999999977 : f32
    %16 = vector.broadcast %cst_10 : f32 to vector<16x32xf32>
    %17 = arith.mulf %16, %15 : vector<16x32xf32>
    %18 = arith.maximumf %15, %17 : vector<16x32xf32>
    %c0_11 = arith.constant 0 : index
    %c0_12 = arith.constant 0 : index
    %19 = vector.load %arg6[%c0_11, %c0_12] : memref<16x32xf32, #tpu.memory_space<vmem>>, vector<16x32xf32>
    tpu.vector_store %arg6[%c0_11, %c0_12], %18 {strides = array<i32>} : memref<16x32xf32, #tpu.memory_space<vmem>>, vector<16x32xf32>,
    return
  }
  func.func @transform_0(%arg0: i32) -> (i32, i32) {
    %c0_i32 = arith.constant 0 : i32
    %c0_i32_0 = arith.constant 0 : i32
    return %c0_i32, %arg0 : i32, i32
  }
  func.func @transform_1(%arg0: i32) -> (i32, i32) {
    %c0_i32 = arith.constant 0 : i32
    %c0_i32_0 = arith.constant 0 : i32
    %c0_i32_1 = arith.constant 0 : i32
    return %c0_i32, %c0_i32_0 : i32, i32
  }
  func.func @transform_2(%arg0: i32) -> (i32, i32) {
    %c0_i32 = arith.constant 0 : i32
    %c0_i32_0 = arith.constant 0 : i32
    %c0_i32_1 = arith.constant 0 : i32
    return %c0_i32, %c0_i32_0 : i32, i32
  }
  func.func @transform_3(%arg0: i32) -> (i32, i32) {
    %c0_i32 = arith.constant 0 : i32
    %c0_i32_0 = arith.constant 0 : i32
    %c0_i32_1 = arith.constant 0 : i32
    return %c0_i32, %c0_i32_0 : i32, i32
  }
  func.func @transform_4(%arg0: i32) -> (i32, i32) {
    %c0_i32 = arith.constant 0 : i32
    %c0_i32_0 = arith.constant 0 : i32
    %c0_i32_1 = arith.constant 0 : i32
    return %c0_i32, %c0_i32_0 : i32, i32
  }
  func.func @transform_5(%arg0: i32) -> (i32, i32) {
    %c0_i32 = arith.constant 0 : i32
    %c0_i32_0 = arith.constant 0 : i32
    return %arg0, %c0_i32 : i32, i32
  }
}

</mosaic_0001>

<llo_original>
// kernel: tpu_custom_call.1
$region0: #{tpu_custom_call.1}
  #allocation0 [shape = 'u32[]', space=smem, size = 0x4, offset = 0x4, fixed_abs, tag = 'smem constant byte address 0x4 - core index']
  #allocation1 [shape = 'u32[144,128]{1,0:T(1,128)}', space=vmem, size = 0x12000, scoped, tag = 'internal scratch']
  %s0 = inlined_call_operand.vmem [shape: f32[1,16], index: 0, kind: input, shape index: {}]
  %s1 = inlined_call_operand.vmem [shape: f32[16,1], index: 1, kind: input, shape index: {}]
  %s2 = inlined_call_operand.vmem [shape: f32[16,1], index: 2, kind: input, shape index: {}]
  %s3 = inlined_call_operand.vmem [shape: f32[16,32], index: 3, kind: input, shape index: {}]
  %s4 = inlined_call_operand.vmem [shape: f32[1,32], index: 4, kind: input, shape index: {}]
  %s5 = inlined_call_operand.hbm [shape: f32[16,32], index: 5, kind: output, shape index: {}]
  %s6 = sld [smem:[#allocation0]]
  $region30: #{tpu_custom_call.1} parent=0
    _
  %s8 = ssub.s32 1, %s6
  %s9 = scalar_select 0, %s8, %s6
  $region1: #{tpu_custom_call.1} parent=0
    #allocation2 [shape = 'u8[8192]{0}', space=vmem, size = 0x2000, scoped, tag = 'output window, operand 0, single buffered']
    #allocation3 [shape = 's32[1]{0}', space=sflag, size = 0x4, scoped, tag = 'scoped memory for tpu_custom_call.1']
    %10 = vsyncpa [#allocation3], 0
    // Predicated region
    $region2: #{tpu_custom_call.1} parent=1 // pred_check
      _
    $region3: #{tpu_custom_call.1} parent=1 // pred_check_branch
      %12 = sbr.rel (0) target = $region5
    $region4: #{tpu_custom_call.1} parent=1 // pred_region
      _
    $region5: #{tpu_custom_call.1} parent=1 // pred_fallthru
      _
    // Predicated region
    $region6: #{tpu_custom_call.1} parent=1 // pred_check
      _
    $region7: #{tpu_custom_call.1} parent=1 // pred_check_branch
      %14 = sbr.rel (0) target = $region9
    $region8: #{tpu_custom_call.1} parent=1 // pred_region
      _
    $region9: #{tpu_custom_call.1} parent=1 // pred_fallthru
      _
    // Predicated region
    $region10: #{tpu_custom_call.1} parent=1 // pred_check
      _
    $region11: #{tpu_custom_call.1} parent=1 // pred_check_branch
      %16 = sbr.rel (0) target = $region13
    $region12: #{tpu_custom_call.1} parent=1 // pred_region
      _
    $region13: #{tpu_custom_call.1} parent=1 // pred_fallthru
      _
    // Predicated region
    $region14: #{tpu_custom_call.1} parent=1 // pred_check
      _
    $region15: #{tpu_custom_call.1} parent=1 // pred_check_branch
      %18 = sbr.rel (0) target = $region17
    $region16: #{tpu_custom_call.1} parent=1 // pred_region
      _
    $region17: #{tpu_custom_call.1} parent=1 // pred_fallthru
      _
    // Predicated region
    $region18: #{tpu_custom_call.1} parent=1 // pred_check
      _
    $region19: #{tpu_custom_call.1} parent=1 // pred_check_branch
      %20 = sbr.rel (0) target = $region21
    $region20: #{tpu_custom_call.1} parent=1 // pred_region
      _
    $region21: #{tpu_custom_call.1} parent=1 // pred_fallthru
      _
    %v21 = vld [vmem:[%s0] sm:$0x1]
    %v22 = vld [vmem:[%s1] sm:$0xff]
    %v23 = vld [vmem:[%s1 + $0x8] sm:$0xff]
    %25 = vset.pattern.permute.xlu0 0
    %26 = vperm.xlu0 %25, %v22
    %v27 = vpop.permute.xlu0 %26
    %30 = vset.pattern.permute.xlu0 0
    %31 = vperm.xlu0 %30, %v23
    %v32 = vpop.permute.xlu0 %31
    %v35 = vlaneseq
    %v36 = vshrl.u32 %v35, 7
    %v37 = vsub.s32 0, %v36
    %v38 = vrot.slane %v21, %v37
    %v40 = vmul.f32 %v27, %v38
    %v41 = vmul.f32 %v32, %v38
    %v42 = vld [vmem:[%s2] sm:$0xff]
    %v43 = vld [vmem:[%s2 + $0x8] sm:$0xff]
    %45 = vset.pattern.permute.xlu0 0
    %46 = vperm.xlu0 %45, %v42
    %v47 = vpop.permute.xlu0 %46
    %50 = vset.pattern.permute.xlu0 0
    %51 = vperm.xlu0 %50, %v43
    %v52 = vpop.permute.xlu0 %51
    %v54 = vadd.f32 %v40, %v47
    %v55 = vadd.f32 %v41, %v52
    %v56 = vmul.f32 %v54, 0.01
    %v57 = vmul.f32 %v55, 0.01
    %v58 = vmax.f32 %v54, %v56
    %v59 = vmax.f32 %v55, %v57
    %v60 = vld [vmem:[%s3] sm:$0xff]
    %v61 = vld [vmem:[%s3 + $0x8] sm:$0xff]
    %v62 = vld [vmem:[%s4] sm:$0x1]
    %v64 = vlaneseq
    %v65 = vshrl.u32 %v64, 7
    %v66 = vsub.s32 0, %v65
    %v67 = vrot.slane %v62, %v66
    %69 = vxpose.xlu0.b32.start [1/16] %v58, 128
    %70 = vxpose.xlu0.b32.cont [2/16] %v59, 128
    %71 = vxpose.xlu0.b32.cont [3/16] 0.0, 128
    %72 = vxpose.xlu0.b32.cont [4/16] 0.0, 128
    %73 = vxpose.xlu0.b32.cont [5/16] 0.0, 128
    %74 = vxpose.xlu0.b32.cont [6/16] 0.0, 128
    %75 = vxpose.xlu0.b32.cont [7/16] 0.0, 128
    %76 = vxpose.xlu0.b32.cont [8/16] 0.0, 128
    %77 = vxpose.xlu0.b32.cont [9/16] 0.0, 128
    %78 = vxpose.xlu0.b32.cont [10/16] 0.0, 128
    %79 = vxpose.xlu0.b32.cont [11/16] 0.0, 128
    %80 = vxpose.xlu0.b32.cont [12/16] 0.0, 128
    %81 = vxpose.xlu0.b32.cont [13/16] 0.0, 128
    %82 = vxpose.xlu0.b32.cont [14/16] 0.0, 128
    %83 = vxpose.xlu0.b32.cont [15/16] 0.0, 128
    %84 = vxpose.xlu0.b32.end [16/16] 0.0, 128
    %v85 = vpop.trf.xlu0
    %v86 = vpop.trf.xlu0
    %v87 = vpop.trf.xlu0
    %v88 = vpop.trf.xlu0
    %v89 = vpop.trf.xlu0
    %v90 = vpop.trf.xlu0
    %v91 = vpop.trf.xlu0
    %v92 = vpop.trf.xlu0
    %v93 = vpop.trf.xlu0
    %v94 = vpop.trf.xlu0
    %v95 = vpop.trf.xlu0
    %v96 = vpop.trf.xlu0
    %v97 = vpop.trf.xlu0
    %v98 = vpop.trf.xlu0
    %v99 = vpop.trf.xlu0
    %v100 = vpop.trf.xlu0
    %vm101 = vcmask 130048
    %v103 = vsel %vm101, %v85, 0
    %v106 = vsel %vm101, %v86, 0
    %108 = vmatprep.subr.mxu0 0.0
    %v109 = vand.u32 %v60, 4294901760
    %110 = vmatpush1.msra.mxu0 %v109
    %111 = vmatprep.subr.mxu0 0.0
    %v112 = vand.u32 %v61, 4294901760
    %113 = vmatpush1.msra.mxu0 %v112
    %114 = vmatprep.subr.mxu0 0.0
    %115 = vmatpush1.msra.mxu0 0.0
    %116 = vmatprep.subr.mxu0 0.0
    %117 = vmatpush1.msra.mxu0 0.0
    %118 = vmatprep.subr.mxu0 0.0
    %119 = vmatpush1.msra.mxu0 0.0
    %120 = vmatprep.subr.mxu0 0.0
    %121 = vmatpush1.msra.mxu0 0.0
    %122 = vmatprep.subr.mxu0 0.0
    %123 = vmatpush1.msra.mxu0 0.0
    %124 = vmatprep.subr.mxu0 0.0
    %125 = vmatpush1.msra.mxu0 0.0
    %126 = vmatprep.subr.mxu0 0.0
    %127 = vmatpush1.msra.mxu0 0.0
    %128 = vmatprep.subr.mxu0 0.0
    %129 = vmatpush1.msra.mxu0 0.0
    %130 = vmatprep.subr.mxu0 0.0
    %131 = vmatpush1.msra.mxu0 0.0
    %132 = vmatprep.subr.mxu0 0.0
    %133 = vmatpush1.msra.mxu0 0.0
    %134 = vmatprep.subr.mxu0 0.0
    %135 = vmatpush1.msra.mxu0 0.0
    %136 = vmatprep.subr.mxu0 0.0
    %137 = vmatpush1.msra.mxu0 0.0
    %138 = vmatprep.subr.mxu0 0.0
    %139 = vmatpush1.msra.mxu0 0.0
    %140 = vmatprep.subr.mxu0 0.0
    %141 = vmatpush1.msra.mxu0 0.0
    %142 = vmatprep.subr.mxu0 0.0
    %143 = vmatpush1.msra.mxu0 0.0
    %144 = vmatprep.subr.mxu0 0.0
    %145 = vmatpush1.msra.mxu0 0.0
    %146 = vmatprep.subr.mxu0 0.0
    %147 = vmatpush1.msra.mxu0 0.0
    %148 = vmatprep.subr.mxu0 0.0
    %149 = vmatpush1.msra.mxu0 0.0
    %150 = vmatprep.subr.mxu0 0.0
    %151 = vmatpush1.msra.mxu0 0.0
    %152 = vmatprep.subr.mxu0 0.0
    %153 = vmatpush1.msra.mxu0 0.0
    %154 = vmatprep.subr.mxu0 0.0
    %155 = vmatpush1.msra.mxu0 0.0
    %156 = vmatprep.subr.mxu0 0.0
    %157 = vmatpush1.msra.mxu0 0.0
    %158 = vmatprep.subr.mxu0 0.0
    %159 = vmatpush1.msra.mxu0 0.0
    %160 = vmatprep.subr.mxu0 0.0
    %161 = vmatpush1.msra.mxu0 0.0
    %162 = vmatprep.subr.mxu0 0.0
    %163 = vmatpush1.msra.mxu0 0.0
    %164 = vmatprep.subr.mxu0 0.0
    %165 = vmatpush1.msra.mxu0 0.0
    %166 = vmatprep.subr.mxu0 0.0
    %167 = vmatpush1.msra.mxu0 0.0
    %168 = vmatprep.subr.mxu0 0.0
    %169 = vmatpush1.msra.mxu0 0.0
    %170 = vmatprep.subr.mxu0 0.0
    %171 = vmatpush1.msra.mxu0 0.0
    %172 = vmatprep.subr.mxu0 0.0
    %173 = vmatpush1.msra.mxu0 0.0
    %174 = vmatprep.mubr.f32.mxu0 0.0
    %v175 = vand.u32 %v103, 4294901760
    %v176 = vsub.f32 %v103, %v175
    %v177 = vand.u32 %v176, 4294901760
    %v178 = vsub.f32 %v176, %v177
    %v179 = vand.u32 %v178, 4294901760
    %180 = vmatmul.mubr.f32.gmra.mrb[0].mxu0 %v179
    %v181 = vpop.f32.mrb[0].mxu0
    %v182 = vadd.f32 %v67, %v181
    %v183 = vpop.f32.mrb[0].mxu0
    %184 = vmatprep.mubr.f32.mxu0 0.0
    %v185 = vand.u32 %v106, 4294901760
    %v186 = vsub.f32 %v106, %v185
    %v187 = vand.u32 %v186, 4294901760
    %v188 = vsub.f32 %v186, %v187
    %v189 = vand.u32 %v188, 4294901760
    %190 = vmatmul.mubr.f32.gmra.mrb[0].mxu0 %v189
    %v191 = vpop.f32.mrb[0].mxu0
    %v192 = vadd.f32 %v67, %v191
    %v193 = vpop.f32.mrb[0].mxu0
    %194 = vdwg.mxu0
    %195 = vmatprep.subr.mxu0 0.0
    %v196 = vand.u32 %v60, 4294901760
    %v197 = vsub.f32 %v60, %v196
    %v198 = vand.u32 %v197, 4294901760
    %v199 = vsub.f32 %v197, %v198
    %v200 = vand.u32 %v199, 4294901760
    %201 = vmatpush1.msra.mxu0 %v200
    %202 = vmatprep.subr.mxu0 0.0
    %v203 = vand.u32 %v61, 4294901760
    %v204 = vsub.f32 %v61, %v203
    %v205 = vand.u32 %v204, 4294901760
    %v206 = vsub.f32 %v204, %v205
    %v207 = vand.u32 %v206, 4294901760
    %208 = vmatpush1.msra.mxu0 %v207
    %209 = vmatprep.subr.mxu0 0.0
    %210 = vmatpush1.msra.mxu0 0.0
    %211 = vmatprep.subr.mxu0 0.0
    %212 = vmatpush1.msra.mxu0 0.0
    %213 = vmatprep.subr.mxu0 0.0
    %214 = vmatpush1.msra.mxu0 0.0
    %215 = vmatprep.subr.mxu0 0.0
    %216 = vmatpush1.msra.mxu0 0.0
    %217 = vmatprep.subr.mxu0 0.0
    %218 = vmatpush1.msra.mxu0 0.0
    %219 = vmatprep.subr.mxu0 0.0
    %220 = vmatpush1.msra.mxu0 0.0
    %221 = vmatprep.subr.mxu0 0.0
    %222 = vmatpush1.msra.mxu0 0.0
    %223 = vmatprep.subr.mxu0 0.0
    %224 = vmatpush1.msra.mxu0 0.0
    %225 = vmatprep.subr.mxu0 0.0
    %226 = vmatpush1.msra.mxu0 0.0
    %227 = vmatprep.subr.mxu0 0.0
    %228 = vmatpush1.msra.mxu0 0.0
    %229 = vmatprep.subr.mxu0 0.0
    %230 = vmatpush1.msra.mxu0 0.0
    %231 = vmatprep.subr.mxu0 0.0
    %232 = vmatpush1.msra.mxu0 0.0
    %233 = vmatprep.subr.mxu0 0.0
    %234 = vmatpush1.msra.mxu0 0.0
    %235 = vmatprep.subr.mxu0 0.0
    %236 = vmatpush1.msra.mxu0 0.0
    %237 = vmatprep.subr.mxu0 0.0
    %238 = vmatpush1.msra.mxu0 0.0
    %239 = vmatprep.subr.mxu0 0.0
    %240 = vmatpush1.msra.mxu0 0.0
    %241 = vmatprep.subr.mxu0 0.0
    %242 = vmatpush1.msra.mxu0 0.0
    %243 = vmatprep.subr.mxu0 0.0
    %244 = vmatpush1.msra.mxu0 0.0
    %245 = vmatprep.subr.mxu0 0.0
    %246 = vmatpush1.msra.mxu0 0.0
    %247 = vmatprep.subr.mxu0 0.0
    %248 = vmatpush1.msra.mxu0 0.0
    %249 = vmatprep.subr.mxu0 0.0
    %250 = vmatpush1.msra.mxu0 0.0
    %251 = vmatprep.subr.mxu0 0.0
    %252 = vmatpush1.msra.mxu0 0.0
    %253 = vmatprep.subr.mxu0 0.0
    %254 = vmatpush1.msra.mxu0 0.0
    %255 = vmatprep.subr.mxu0 0.0
    %256 = vmatpush1.msra.mxu0 0.0
    %257 = vmatprep.subr.mxu0 0.0
    %258 = vmatpush1.msra.mxu0 0.0
    %259 = vmatprep.subr.mxu0 0.0
    %260 = vmatpush1.msra.mxu0 0.0
    %261 = vmatprep.subr.mxu0 0.0
    %262 = vmatpush1.msra.mxu0 0.0
    %263 = vmatprep.subr.mxu0 0.0
    %264 = vmatpush1.msra.mxu0 0.0
    %265 = vmatprep.subr.mxu0 0.0
    %266 = vmatpush1.msra.mxu0 0.0
    %267 = vmatprep.subr.mxu0 0.0
    %268 = vmatpush1.msra.mxu0 0.0
    %269 = vmatprep.mubr.f32.mxu0 0.0
    %v270 = vand.u32 %v103, 4294901760
    %271 = vmatmul.mubr.f32.gmra.mrb[0].mxu0 %v270
    %v272 = vpop.f32.mrb[0].mxu0
    %v273 = vadd.f32 %v182, %v272
    %v274 = vpop.f32.mrb[0].mxu0
    %275 = vmatprep.mubr.f32.mxu0 0.0
    %v276 = vand.u32 %v106, 4294901760
    %277 = vmatmul.mubr.f32.gmra.mrb[0].mxu0 %v276
    %v278 = vpop.f32.mrb[0].mxu0
    %v279 = vadd.f32 %v192, %v278
    %v280 = vpop.f32.mrb[0].mxu0
    %281 = vdwg.mxu0
    %282 = vmatprep.subr.mxu0 0.0
    %v283 = vand.u32 %v60, 4294901760
    %v284 = vsub.f32 %v60, %v283
    %285 = vmatpush1.msra.mxu0 %v284
    %286 = vmatprep.subr.mxu0 0.0
    %v287 = vand.u32 %v61, 4294901760
    %v288 = vsub.f32 %v61, %v287
    %289 = vmatpush1.msra.mxu0 %v288
    %290 = vmatprep.subr.mxu0 0.0
    %291 = vmatpush1.msra.mxu0 0.0
    %292 = vmatprep.subr.mxu0 0.0
    %293 = vmatpush1.msra.mxu0 0.0
    %294 = vmatprep.subr.mxu0 0.0
    %295 = vmatpush1.msra.mxu0 0.0
    %296 = vmatprep.subr.mxu0 0.0
    %297 = vmatpush1.msra.mxu0 0.0
    %298 = vmatprep.subr.mxu0 0.0
    %299 = vmatpush1.msra.mxu0 0.0
    %300 = vmatprep.subr.mxu0 0.0
    %301 = vmatpush1.msra.mxu0 0.0
    %302 = vmatprep.subr.mxu0 0.0
    %303 = vmatpush1.msra.mxu0 0.0
    %304 = vmatprep.subr.mxu0 0.0
    %305 = vmatpush1.msra.mxu0 0.0
    %306 = vmatprep.subr.mxu0 0.0
    %307 = vmatpush1.msra.mxu0 0.0
    %308 = vmatprep.subr.mxu0 0.0
    %309 = vmatpush1.msra.mxu0 0.0
    %310 = vmatprep.subr.mxu0 0.0
    %311 = vmatpush1.msra.mxu0 0.0
    %312 = vmatprep.subr.mxu0 0.0
    %313 = vmatpush1.msra.mxu0 0.0
    %314 = vmatprep.subr.mxu0 0.0
    %315 = vmatpush1.msra.mxu0 0.0
    %316 = vmatprep.subr.mxu0 0.0
    %317 = vmatpush1.msra.mxu0 0.0
    %318 = vmatprep.subr.mxu0 0.0
    %319 = vmatpush1.msra.mxu0 0.0
    %320 = vmatprep.subr.mxu0 0.0
    %321 = vmatpush1.msra.mxu0 0.0
    %322 = vmatprep.subr.mxu0 0.0
    %323 = vmatpush1.msra.mxu0 0.0
    %324 = vmatprep.subr.mxu0 0.0
    %325 = vmatpush1.msra.mxu0 0.0
    %326 = vmatprep.subr.mxu0 0.0
    %327 = vmatpush1.msra.mxu0 0.0
    %328 = vmatprep.subr.mxu0 0.0
    %329 = vmatpush1.msra.mxu0 0.0
    %330 = vmatprep.subr.mxu0 0.0
    %331 = vmatpush1.msra.mxu0 0.0
    %332 = vmatprep.subr.mxu0 0.0
    %333 = vmatpush1.msra.mxu0 0.0
    %334 = vmatprep.subr.mxu0 0.0
    %335 = vmatpush1.msra.mxu0 0.0
    %336 = vmatprep.subr.mxu0 0.0
    %337 = vmatpush1.msra.mxu0 0.0
    %338 = vmatprep.subr.mxu0 0.0
    %339 = vmatpush1.msra.mxu0 0.0
    %340 = vmatprep.subr.mxu0 0.0
    %341 = vmatpush1.msra.mxu0 0.0
    %342 = vmatprep.subr.mxu0 0.0
    %343 = vmatpush1.msra.mxu0 0.0
    %344 = vmatprep.subr.mxu0 0.0
    %345 = vmatpush1.msra.mxu0 0.0
    %346 = vmatprep.subr.mxu0 0.0
    %347 = vmatpush1.msra.mxu0 0.0
    %348 = vmatprep.subr.mxu0 0.0
    %349 = vmatpush1.msra.mxu0 0.0
    %350 = vmatprep.mubr.f32.mxu0 0.0
    %v351 = vand.u32 %v103, 4294901760
    %v352 = vsub.f32 %v103, %v351
    %353 = vmatmul.mubr.f32.gmra.mrb[0].mxu0 %v352
    %v354 = vpop.f32.mrb[0].mxu0
    %v355 = vadd.f32 %v273, %v354
    %v356 = vpop.f32.mrb[0].mxu0
    %357 = vmatprep.mubr.f32.mxu0 0.0
    %v358 = vand.u32 %v106, 4294901760
    %v359 = vsub.f32 %v106, %v358
    %360 = vmatmul.mubr.f32.gmra.mrb[0].mxu0 %v359
    %v361 = vpop.f32.mrb[0].mxu0
    %v362 = vadd.f32 %v279, %v361
    %v363 = vpop.f32.mrb[0].mxu0
    %364 = vdwg.mxu0
    %365 = vmatprep.subr.mxu0 0.0
    %v366 = vand.u32 %v60, 4294901760
    %367 = vmatpush1.msra.mxu0 %v366
    %368 = vmatprep.subr.mxu0 0.0
    %v369 = vand.u32 %v61, 4294901760
    %370 = vmatpush1.msra.mxu0 %v369
    %371 = vmatprep.subr.mxu0 0.0
    %372 = vmatpush1.msra.mxu0 0.0
    %373 = vmatprep.subr.mxu0 0.0
    %374 = vmatpush1.msra.mxu0 0.0
    %375 = vmatprep.subr.mxu0 0.0
    %376 = vmatpush1.msra.mxu0 0.0
    %377 = vmatprep.subr.mxu0 0.0
    %378 = vmatpush1.msra.mxu0 0.0
    %379 = vmatprep.subr.mxu0 0.0
    %380 = vmatpush1.msra.mxu0 0.0
    %381 = vmatprep.subr.mxu0 0.0
    %382 = vmatpush1.msra.mxu0 0.0
    %383 = vmatprep.subr.mxu0 0.0
    %384 = vmatpush1.msra.mxu0 0.0
    %385 = vmatprep.subr.mxu0 0.0
    %386 = vmatpush1.msra.mxu0 0.0
    %387 = vmatprep.subr.mxu0 0.0
    %388 = vmatpush1.msra.mxu0 0.0
    %389 = vmatprep.subr.mxu0 0.0
    %390 = vmatpush1.msra.mxu0 0.0
    %391 = vmatprep.subr.mxu0 0.0
    %392 = vmatpush1.msra.mxu0 0.0
    %393 = vmatprep.subr.mxu0 0.0
    %394 = vmatpush1.msra.mxu0 0.0
    %395 = vmatprep.subr.mxu0 0.0
    %396 = vmatpush1.msra.mxu0 0.0
    %397 = vmatprep.subr.mxu0 0.0
    %398 = vmatpush1.msra.mxu0 0.0
    %399 = vmatprep.subr.mxu0 0.0
    %400 = vmatpush1.msra.mxu0 0.0
    %401 = vmatprep.subr.mxu0 0.0
    %402 = vmatpush1.msra.mxu0 0.0
    %403 = vmatprep.subr.mxu0 0.0
    %404 = vmatpush1.msra.mxu0 0.0
    %405 = vmatprep.subr.mxu0 0.0
    %406 = vmatpush1.msra.mxu0 0.0
    %407 = vmatprep.subr.mxu0 0.0
    %408 = vmatpush1.msra.mxu0 0.0
    %409 = vmatprep.subr.mxu0 0.0
    %410 = vmatpush1.msra.mxu0 0.0
    %411 = vmatprep.subr.mxu0 0.0
    %412 = vmatpush1.msra.mxu0 0.0
    %413 = vmatprep.subr.mxu0 0.0
    %414 = vmatpush1.msra.mxu0 0.0
    %415 = vmatprep.subr.mxu0 0.0
    %416 = vmatpush1.msra.mxu0 0.0
    %417 = vmatprep.subr.mxu0 0.0
    %418 = vmatpush1.msra.mxu0 0.0
    %419 = vmatprep.subr.mxu0 0.0
    %420 = vmatpush1.msra.mxu0 0.0
    %421 = vmatprep.subr.mxu0 0.0
    %422 = vmatpush1.msra.mxu0 0.0
    %423 = vmatprep.subr.mxu0 0.0
    %424 = vmatpush1.msra.mxu0 0.0
    %425 = vmatprep.subr.mxu0 0.0
    %426 = vmatpush1.msra.mxu0 0.0
    %427 = vmatprep.subr.mxu0 0.0
    %428 = vmatpush1.msra.mxu0 0.0
    %429 = vmatprep.subr.mxu0 0.0
    %430 = vmatpush1.msra.mxu0 0.0
    %431 = vmatprep.mubr.f32.mxu0 0.0
    %v432 = vand.u32 %v103, 4294901760
    %v433 = vsub.f32 %v103, %v432
    %v434 = vand.u32 %v433, 4294901760
    %435 = vmatmul.mubr.f32.gmra.mrb[0].mxu0 %v434
    %v436 = vpop.f32.mrb[0].mxu0
    %v437 = vadd.f32 %v355, %v436
    %v438 = vpop.f32.mrb[0].mxu0
    %439 = vmatprep.mubr.f32.mxu0 0.0
    %v440 = vand.u32 %v106, 4294901760
    %v441 = vsub.f32 %v106, %v440
    %v442 = vand.u32 %v441, 4294901760
    %443 = vmatmul.mubr.f32.gmra.mrb[0].mxu0 %v442
    %v444 = vpop.f32.mrb[0].mxu0
    %v445 = vadd.f32 %v362, %v444
    %v446 = vpop.f32.mrb[0].mxu0
    %447 = vdwg.mxu0
    %448 = vmatprep.subr.mxu0 0.0
    %v449 = vand.u32 %v60, 4294901760
    %v450 = vsub.f32 %v60, %v449
    %v451 = vand.u32 %v450, 4294901760
    %452 = vmatpush1.msra.mxu0 %v451
    %453 = vmatprep.subr.mxu0 0.0
    %v454 = vand.u32 %v61, 4294901760
    %v455 = vsub.f32 %v61, %v454
    %v456 = vand.u32 %v455, 4294901760
    %457 = vmatpush1.msra.mxu0 %v456
    %458 = vmatprep.subr.mxu0 0.0
    %459 = vmatpush1.msra.mxu0 0.0
    %460 = vmatprep.subr.mxu0 0.0
    %461 = vmatpush1.msra.mxu0 0.0
    %462 = vmatprep.subr.mxu0 0.0
    %463 = vmatpush1.msra.mxu0 0.0
    %464 = vmatprep.subr.mxu0 0.0
    %465 = vmatpush1.msra.mxu0 0.0
    %466 = vmatprep.subr.mxu0 0.0
    %467 = vmatpush1.msra.mxu0 0.0
    %468 = vmatprep.subr.mxu0 0.0
    %469 = vmatpush1.msra.mxu0 0.0
    %470 = vmatprep.subr.mxu0 0.0
    %471 = vmatpush1.msra.mxu0 0.0
    %472 = vmatprep.subr.mxu0 0.0
    %473 = vmatpush1.msra.mxu0 0.0
    %474 = vmatprep.subr.mxu0 0.0
    %475 = vmatpush1.msra.mxu0 0.0
    %476 = vmatprep.subr.mxu0 0.0
    %477 = vmatpush1.msra.mxu0 0.0
    %478 = vmatprep.subr.mxu0 0.0
    %479 = vmatpush1.msra.mxu0 0.0
    %480 = vmatprep.subr.mxu0 0.0
    %481 = vmatpush1.msra.mxu0 0.0
    %482 = vmatprep.subr.mxu0 0.0
    %483 = vmatpush1.msra.mxu0 0.0
    %484 = vmatprep.subr.mxu0 0.0
    %485 = vmatpush1.msra.mxu0 0.0
    %486 = vmatprep.subr.mxu0 0.0
    %487 = vmatpush1.msra.mxu0 0.0
    %488 = vmatprep.subr.mxu0 0.0
    %489 = vmatpush1.msra.mxu0 0.0
    %490 = vmatprep.subr.mxu0 0.0
    %491 = vmatpush1.msra.mxu0 0.0
    %492 = vmatprep.subr.mxu0 0.0
    %493 = vmatpush1.msra.mxu0 0.0
    %494 = vmatprep.subr.mxu0 0.0
    %495 = vmatpush1.msra.mxu0 0.0
    %496 = vmatprep.subr.mxu0 0.0
    %497 = vmatpush1.msra.mxu0 0.0
    %498 = vmatprep.subr.mxu0 0.0
    %499 = vmatpush1.msra.mxu0 0.0
    %500 = vmatprep.subr.mxu0 0.0
    %501 = vmatpush1.msra.mxu0 0.0
    %502 = vmatprep.subr.mxu0 0.0
    %503 = vmatpush1.msra.mxu0 0.0
    %504 = vmatprep.subr.mxu0 0.0
    %505 = vmatpush1.msra.mxu0 0.0
    %506 = vmatprep.subr.mxu0 0.0
    %507 = vmatpush1.msra.mxu0 0.0
    %508 = vmatprep.subr.mxu0 0.0
    %509 = vmatpush1.msra.mxu0 0.0
    %510 = vmatprep.subr.mxu0 0.0
    %511 = vmatpush1.msra.mxu0 0.0
    %512 = vmatprep.subr.mxu0 0.0
    %513 = vmatpush1.msra.mxu0 0.0
    %514 = vmatprep.subr.mxu0 0.0
    %515 = vmatpush1.msra.mxu0 0.0
    %516 = vmatprep.subr.mxu0 0.0
    %517 = vmatpush1.msra.mxu0 0.0
    %518 = vmatprep.mubr.f32.mxu0 0.0
    %v519 = vand.u32 %v103, 4294901760
    %520 = vmatmul.mubr.f32.gmra.mrb[0].mxu0 %v519
    %v521 = vpop.f32.mrb[0].mxu0
    %v522 = vadd.f32 %v437, %v521
    %v523 = vpop.f32.mrb[0].mxu0
    %524 = vmatprep.mubr.f32.mxu0 0.0
    %v525 = vand.u32 %v106, 4294901760
    %526 = vmatmul.mubr.f32.gmra.mrb[0].mxu0 %v525
    %v527 = vpop.f32.mrb[0].mxu0
    %v528 = vadd.f32 %v445, %v527
    %v529 = vpop.f32.mrb[0].mxu0
    %530 = vdwg.mxu0
    %531 = vmatprep.subr.mxu0 0.0
    %v532 = vand.u32 %v60, 4294901760
    %533 = vmatpush1.msra.mxu0 %v532
    %534 = vmatprep.subr.mxu0 0.0
    %v535 = vand.u32 %v61, 4294901760
    %536 = vmatpush1.msra.mxu0 %v535
    %537 = vmatprep.subr.mxu0 0.0
    %538 = vmatpush1.msra.mxu0 0.0
    %539 = vmatprep.subr.mxu0 0.0
    %540 = vmatpush1.msra.mxu0 0.0
    %541 = vmatprep.subr.mxu0 0.0
    %542 = vmatpush1.msra.mxu0 0.0
    %543 = vmatprep.subr.mxu0 0.0
    %544 = vmatpush1.msra.mxu0 0.0
    %545 = vmatprep.subr.mxu0 0.0
    %546 = vmatpush1.msra.mxu0 0.0
    %547 = vmatprep.subr.mxu0 0.0
    %548 = vmatpush1.msra.mxu0 0.0
    %549 = vmatprep.subr.mxu0 0.0
    %550 = vmatpush1.msra.mxu0 0.0
    %551 = vmatprep.subr.mxu0 0.0
    %552 = vmatpush1.msra.mxu0 0.0
    %553 = vmatprep.subr.mxu0 0.0
    %554 = vmatpush1.msra.mxu0 0.0
    %555 = vmatprep.subr.mxu0 0.0
    %556 = vmatpush1.msra.mxu0 0.0
    %557 = vmatprep.subr.mxu0 0.0
    %558 = vmatpush1.msra.mxu0 0.0
    %559 = vmatprep.subr.mxu0 0.0
    %560 = vmatpush1.msra.mxu0 0.0
    %561 = vmatprep.subr.mxu0 0.0
    %562 = vmatpush1.msra.mxu0 0.0
    %563 = vmatprep.subr.mxu0 0.0
    %564 = vmatpush1.msra.mxu0 0.0
    %565 = vmatprep.subr.mxu0 0.0
    %566 = vmatpush1.msra.mxu0 0.0
    %567 = vmatprep.subr.mxu0 0.0
    %568 = vmatpush1.msra.mxu0 0.0
    %569 = vmatprep.subr.mxu0 0.0
    %570 = vmatpush1.msra.mxu0 0.0
    %571 = vmatprep.subr.mxu0 0.0
    %572 = vmatpush1.msra.mxu0 0.0
    %573 = vmatprep.subr.mxu0 0.0
    %574 = vmatpush1.msra.mxu0 0.0
    %575 = vmatprep.subr.mxu0 0.0
    %576 = vmatpush1.msra.mxu0 0.0
    %577 = vmatprep.subr.mxu0 0.0
    %578 = vmatpush1.msra.mxu0 0.0
    %579 = vmatprep.subr.mxu0 0.0
    %580 = vmatpush1.msra.mxu0 0.0
    %581 = vmatprep.subr.mxu0 0.0
    %582 = vmatpush1.msra.mxu0 0.0
    %583 = vmatprep.subr.mxu0 0.0
    %584 = vmatpush1.msra.mxu0 0.0
    %585 = vmatprep.subr.mxu0 0.0
    %586 = vmatpush1.msra.mxu0 0.0
    %587 = vmatprep.subr.mxu0 0.0
    %588 = vmatpush1.msra.mxu0 0.0
    %589 = vmatprep.subr.mxu0 0.0
    %590 = vmatpush1.msra.mxu0 0.0
    %591 = vmatprep.subr.mxu0 0.0
    %592 = vmatpush1.msra.mxu0 0.0
    %593 = vmatprep.subr.mxu0 0.0
    %594 = vmatpush1.msra.mxu0 0.0
    %595 = vmatprep.subr.mxu0 0.0
    %596 = vmatpush1.msra.mxu0 0.0
    %597 = vmatprep.mubr.f32.mxu0 0.0
    %v598 = vand.u32 %v103, 4294901760
    %599 = vmatmul.mubr.f32.gmra.mrb[0].mxu0 %v598
    %v600 = vpop.f32.mrb[0].mxu0
    %v601 = vadd.f32 %v522, %v600
    %v602 = vpop.f32.mrb[0].mxu0
    %603 = vmatprep.mubr.f32.mxu0 0.0
    %v604 = vand.u32 %v106, 4294901760
    %605 = vmatmul.mubr.f32.gmra.mrb[0].mxu0 %v604
    %v606 = vpop.f32.mrb[0].mxu0
    %v607 = vadd.f32 %v528, %v606
    %v608 = vpop.f32.mrb[0].mxu0
    %609 = vdwg.mxu0
    %v610 = vmul.f32 %v601, 0.01
    %v611 = vmul.f32 %v607, 0.01
    %v612 = vmax.f32 %v601, %v610
    %v613 = vmax.f32 %v607, %v611
    %vm614 = vcmask 261120
    %615 = vst.msk [vmem:[#allocation2] sm:$0xff] %vm614, %v612
    %616 = vst.msk [vmem:[#allocation2 + $0x8] sm:$0xff] %vm614, %v613
    // Predicated region
    $region22: #{tpu_custom_call.1} parent=1 // pred_check
      _
    $region23: #{tpu_custom_call.1} parent=1 // pred_check_branch
      %618 = sbr.rel (0) target = $region25
    $region24: #{tpu_custom_call.1} parent=1 // pred_region
      %s620 = ssub.s32 256, 256
      %621 = vsyncadd [#allocation3], %s620
      %s622 = sshll.u32 [#allocation2], 4
      %s623 = int_to_ptr.vmem [resolvable:$true] %s622
      %628 = dma.vmem_to_hbm [thread:$0]  %s623, 256, %s5, [#allocation3], 128, 128, 8
    $region25: #{tpu_custom_call.1} parent=1 // pred_fallthru
      _
    // Predicated region
    $region26: #{tpu_custom_call.1} parent=1 // pred_check
      _
    $region27: #{tpu_custom_call.1} parent=1 // pred_check_branch
      %630 = sbr.rel (0) target = $region29
    $region28: #{tpu_custom_call.1} parent=1 // pred_region
      %631 = dma.done [#allocation3], 256
    $region29: #{tpu_custom_call.1} parent=1 // pred_fallthru
      _
    %632 = vsyncpa [#allocation3], 1

</llo_original>
